<compile_context>
chip_gen: v7x
topology: tpu7x:2x2x1
jax: 0.10.0
libtpu: 0.0.40
codegen_flags: <defaults>
</compile_context>

<pallas_src>
import math
import functools

import jax
import jax.numpy as jnp
from jax.experimental import pallas as pl
from jax.experimental.pallas import tpu as pltpu


def _cdiv(a, b):
    return -(-a // b)


def _round_up(v, m):
    return _cdiv(v, m) * m


# ----------------------------------------------------------------------------
# Kernels
# ----------------------------------------------------------------------------
def _fix_linear_kernel_single_k(x_ref, w_ref, b_ref, o_ref, *, scale, use_bf16):
    """Whole K in one tile: Y_tile = scale * (X_tile @ W_tile) + b_tile."""
    lhs = x_ref[...]
    rhs = w_ref[...]
    if use_bf16:
        lhs = lhs.astype(jnp.bfloat16)
        rhs = rhs.astype(jnp.bfloat16)
    acc = jnp.dot(lhs, rhs, preferred_element_type=jnp.float32)
    o_ref[...] = (acc * scale + b_ref[...]).astype(o_ref.dtype)


def _fix_linear_kernel_ksplit(x_ref, w_ref, b_ref, o_ref, *, scale, use_bf16):
    """K split across grid axis 2; accumulate directly into the f32 output tile."""
    k = pl.program_id(2)

    @pl.when(k == 0)
    def _():
        o_ref[...] = jnp.zeros_like(o_ref)

    lhs = x_ref[...]
    rhs = w_ref[...]
    if use_bf16:
        lhs = lhs.astype(jnp.bfloat16)
        rhs = rhs.astype(jnp.bfloat16)
    o_ref[...] += jnp.dot(lhs, rhs, preferred_element_type=jnp.float32)

    @pl.when(k == pl.num_programs(2) - 1)
    def _():
        # Y = scale * (X @ W) + b   (bias broadcasts over rows)
        o_ref[...] = o_ref[...] * scale + b_ref[...]


# ----------------------------------------------------------------------------
# Wrapper
# ----------------------------------------------------------------------------
def layer_fix_linear(x, W, b, *, use_bf16_matmul=False):
    """Pallas implementation of Layer_Fix_Linear.forward.

    x: [M, n_in] f32, W: [n_in, n_out] f32, b: [n_out] f32 -> [M, n_out] f32.
    Arbitrary (non tile-multiple) shapes are handled by zero-padding.
    """
    M, K = x.shape
    K2, N = W.shape
    assert K == K2 and b.shape == (N,)
    scale = 1.0 / math.sqrt(K)  # uses the true n_in, independent of padding

    # ---- tile selection (safe for v5e/v6e/v7x VMEM budgets) -----------------
    TM_T, TN_T, TK_T = 256, 512, 512   # target tile sizes
    K_COLLAPSE = 2048                  # collapse reduction axis if K_pad <= this

    m_min = _round_up(M, 8)
    n_min = _round_up(N, 128)
    k_min = _round_up(K, 128)

    gm = _cdiv(m_min, TM_T)
    tm = _round_up(_cdiv(m_min, gm), 8)
    gn = _cdiv(n_min, TN_T)
    tn = _round_up(_cdiv(n_min, gn), 128)
    if k_min <= K_COLLAPSE:
        gk, tk = 1, k_min
    else:
        gk = _cdiv(k_min, TK_T)
        tk = _round_up(_cdiv(k_min, gk), 128)

    M_pad, N_pad, K_pad = gm * tm, gn * tn, gk * tk

    # ---- pad inputs to tile multiples (zeros are inert in the matmul) -------
    if (M_pad, K_pad) != (M, K):
        x = jnp.pad(x, ((0, M_pad - M), (0, K_pad - K)))
    if (K_pad, N_pad) != (K, N):
        W = jnp.pad(W, ((0, K_pad - K), (0, N_pad - N)))
    if N_pad != N:
        b = jnp.pad(b, (0, N_pad - N))
    b2d = b.reshape(1, N_pad)  # lane-major 2-D layout for the bias

    # ---- explicit VMEM budget (double-buffered inputs + resident output) ----
    fp32 = 4
    footprint = 2 * (tm * tk + tk * tn + tn) * fp32 + 2 * tm * tn * fp32
    vmem_limit = min(48 * 1024 * 1024, max(32 * 1024 * 1024, 2 * footprint))

    out_shape = jax.ShapeDtypeStruct((M_pad, N_pad), jnp.float32)

    if gk == 1:
        # Single-K path: no reduction axis, no scratch, no conditionals.
        kernel = functools.partial(
            _fix_linear_kernel_single_k, scale=scale, use_bf16=use_bf16_matmul
        )
        y = pl.pallas_call(
            kernel,
            out_shape=out_shape,
            grid_spec=pltpu.PrefetchScalarGridSpec(
                num_scalar_prefetch=0,
                grid=(gm, gn),
                in_specs=[
                    pl.BlockSpec((tm, tk), lambda i, j: (i, 0)),   # X tile
                    pl.BlockSpec((tk, tn), lambda i, j: (0, j)),   # W tile
                    pl.BlockSpec((1, tn), lambda i, j: (0, j)),    # bias tile
                ],
                out_specs=pl.BlockSpec((tm, tn), lambda i, j: (i, j)),
            ),
            compiler_params=pltpu.CompilerParams(
                dimension_semantics=("parallel", "parallel"),
                vmem_limit_bytes=vmem_limit,
            ),
        )(x, W, b2d)
    else:
        # K-split path: accumulate into the resident f32 output tile.
        kernel = functools.partial(
            _fix_linear_kernel_ksplit, scale=scale, use_bf16=use_bf16_matmul
        )
        y = pl.pallas_call(
            kernel,
            out_shape=out_shape,
            grid_spec=pltpu.PrefetchScalarGridSpec(
                num_scalar_prefetch=0,
                grid=(gm, gn, gk),
                in_specs=[
                    pl.BlockSpec((tm, tk), lambda i, j, k: (i, k)),   # X tile
                    pl.BlockSpec((tk, tn), lambda i, j, k: (k, j)),   # W tile
                    pl.BlockSpec((1, tn), lambda i, j, k: (0, j)),    # bias tile
                ],
                out_specs=pl.BlockSpec((tm, tn), lambda i, j, k: (i, j)),
            ),
            compiler_params=pltpu.CompilerParams(
                dimension_semantics=("parallel", "parallel", "arbitrary"),
                vmem_limit_bytes=vmem_limit,
            ),
        )(x, W, b2d)

    if (M_pad, N_pad) != (M, N):
        y = y[:M, :N]
    return y


# ----------------------------------------------------------------------------
# Test
# ----------------------------------------------------------------------------
if __name__ == "__main__":
    def _check(batch, n_in, n_out, key):
        kx, kw = jax.random.split(key)
        # Module config (fix_flag=False): W ~ N(0, 1), b = 0.
        x = jax.random.normal(kx, (batch, n_in), dtype=jnp.float32)
        W = jax.random.normal(kw, (n_in, n_out), dtype=jnp.float32)
        b = jnp.zeros((n_out,), dtype=jnp.float32)

        y = jax.block_until_ready(layer_fix_linear(x, W, b))

        y_ref = (
            jnp.dot(x, W / math.sqrt(n_in), precision=jax.lax.Precision.HIGHEST) + b
        )
        assert y.shape == (batch, n_out)
        assert jnp.allclose(y, y_ref, atol=2e-4, rtol=2e-4), (batch, n_in, n_out)

    key = jax.random.PRNGKey(0)
    k1, k2, k3 = jax.random.split(key, 3)

    _check(8, 32, 64, k1)       # small config -> single (8, 128) block
    _check(128, 256, 128, k2)   # shipped-style config -> single block, grid (1, 1)
    _check(70, 300, 200, k3)    # non tile-multiple dims -> padded wrapper path

    print("KERNEL_OK")
</pallas_src>

<mosaic_0001>
module attributes {stable_mosaic.version = 11 : i64} {
  func.func @_fix_linear_kernel_single_k(%arg0: i32, %arg1: i32, %arg2: memref<8x128xf32, #tpu.memory_space<vmem>>, %arg3: memref<128x128xf32, #tpu.memory_space<vmem>>, %arg4: memref<1x128xf32, #tpu.memory_space<vmem>>, %arg5: memref<8x128xf32, #tpu.memory_space<vmem>>) attributes {dimension_semantics = [#tpu.dimension_semantics<parallel>, #tpu.dimension_semantics<parallel>], iteration_bounds = array<i64: 1, 1>, scalar_prefetch = 0 : i64, scratch_operands = 0 : i64, tpu.core_type = #tpu.core_type<tc>, window_params = [{transform_indices = @transform_0, window_bounds = array<i64: 8, 128>}, {transform_indices = @transform_1, window_bounds = array<i64: 128, 128>}, {transform_indices = @transform_2, window_bounds = array<i64: 1, 128>}, {transform_indices = @transform_3, window_bounds = array<i64: 8, 128>}]} {
    %c0 = arith.constant 0 : index
    %c0_0 = arith.constant 0 : index
    %0 = vector.load %arg2[%c0, %c0_0] : memref<8x128xf32, #tpu.memory_space<vmem>>, vector<8x128xf32>
    %c0_1 = arith.constant 0 : index
    %c0_2 = arith.constant 0 : index
    %1 = vector.load %arg3[%c0_1, %c0_2] : memref<128x128xf32, #tpu.memory_space<vmem>>, vector<128x128xf32>
    %cst = arith.constant dense<0.000000e+00> : vector<8x128xf32>
    %2 = tpu.matmul %0, %1, %cst {dimension_numbers = #tpu.dot_dimension_numbers<[1], [0], [0], [1], [0, 0, 1, 1], [], []>} : vector<8x128xf32>, vector<128x128xf32>, vector<8x128xf32> -> vector<8x128xf32>
    %cst_3 = arith.constant 0.176776692 : f32
    %3 = vector.broadcast %cst_3 : f32 to vector<8x128xf32>
    %4 = arith.mulf %2, %3 : vector<8x128xf32>
    %c0_4 = arith.constant 0 : index
    %c0_5 = arith.constant 0 : index
    %5 = vector.load %arg4[%c0_4, %c0_5] : memref<1x128xf32, #tpu.memory_space<vmem>>, vector<1x128xf32>
    %6 = vector.broadcast %5 : vector<1x128xf32> to vector<8x128xf32>
    %7 = arith.addf %4, %6 : vector<8x128xf32>
    %c0_6 = arith.constant 0 : index
    %c0_7 = arith.constant 0 : index
    %8 = vector.load %arg5[%c0_6, %c0_7] : memref<8x128xf32, #tpu.memory_space<vmem>>, vector<8x128xf32>
    tpu.vector_store %arg5[%c0_6, %c0_7], %7 {strides = array<i32>} : memref<8x128xf32, #tpu.memory_space<vmem>>, vector<8x128xf32>,
    return
  }
  func.func @transform_0(%arg0: i32, %arg1: i32) -> (i32, i32) {
    %c0_i32 = arith.constant 0 : i32
    %c0_i32_0 = arith.constant 0 : i32
    return %arg0, %c0_i32 : i32, i32
  }
  func.func @transform_1(%arg0: i32, %arg1: i32) -> (i32, i32) {
    %c0_i32 = arith.constant 0 : i32
    %c0_i32_0 = arith.constant 0 : i32
    return %c0_i32, %arg1 : i32, i32
  }
  func.func @transform_2(%arg0: i32, %arg1: i32) -> (i32, i32) {
    %c0_i32 = arith.constant 0 : i32
    %c0_i32_0 = arith.constant 0 : i32
    return %c0_i32, %arg1 : i32, i32
  }
  func.func @transform_3(%arg0: i32, %arg1: i32) -> (i32, i32) {
    %c0_i32 = arith.constant 0 : i32
    return %arg0, %arg1 : i32, i32
  }
}

</mosaic_0001>

<llo_original>
// kernel: tpu_custom_call.1
$region0: #{tpu_custom_call.1}
  #allocation0 [shape = 'u32[]', space=smem, size = 0x4, offset = 0x4, fixed_abs, tag = 'smem constant byte address 0x4 - core index']
  #allocation1 [shape = 'u32[144,128]{1,0:T(1,128)}', space=vmem, size = 0x12000, scoped, tag = 'internal scratch']
  %s0 = inlined_call_operand.hbm [shape: f32[8,128], index: 0, kind: input, shape index: {}]
  %s1 = inlined_call_operand.hbm [shape: f32[128,128], index: 1, kind: input, shape index: {}]
  %s2 = inlined_call_operand.vmem [shape: f32[1,128], index: 2, kind: input, shape index: {}]
  %s3 = inlined_call_operand.hbm [shape: f32[8,128], index: 3, kind: output, shape index: {}]
  %s4 = sld [smem:[#allocation0]]
  $region30: #{tpu_custom_call.1} parent=0
    _
  %s6 = ssub.s32 1, %s4
  %s7 = scalar_select 0, %s6, %s4
  $region1: #{tpu_custom_call.1} parent=0
    #allocation2 [shape = 'u8[4096]{0}', space=vmem, size = 0x1000, scoped, tag = 'input window, operand 0, single buffered']
    #allocation3 [shape = 's32[1]{0}', space=sflag, size = 0x4, scoped, tag = 'scoped memory for tpu_custom_call.1']
    #allocation4 [shape = 's32[1]{0}', space=sflag, size = 0x4, scoped, tag = 'scoped memory for tpu_custom_call.1']
    #allocation5 [shape = 'u8[65536]{0}', space=vmem, size = 0x10000, scoped, tag = 'input window, operand 1, single buffered']
    #allocation6 [shape = 's32[1]{0}', space=sflag, size = 0x4, scoped, tag = 'scoped memory for tpu_custom_call.1']
    #allocation7 [shape = 'u8[4096]{0}', space=vmem, size = 0x1000, scoped, tag = 'output window, operand 0, single buffered']
    %8 = vsyncpa [#allocation3], 0
    %9 = vsyncpa [#allocation6], 0
    %10 = vsyncpa [#allocation4], 0
    // Predicated region
    $region2: #{tpu_custom_call.1} parent=1 // pred_check
      _
    $region3: #{tpu_custom_call.1} parent=1 // pred_check_branch
      %12 = sbr.rel (0) target = $region5
    $region4: #{tpu_custom_call.1} parent=1 // pred_region
      %s14 = ssub.s32 128, 128
      %15 = vsyncadd [#allocation3], %s14
      %s17 = sshll.u32 [#allocation2], 4
      %s18 = int_to_ptr.vmem [resolvable:$true] %s17
      %20 = dma.hbm_to_vmem [thread:$0]  %s0, 128, %s18, [#allocation3]
    $region5: #{tpu_custom_call.1} parent=1 // pred_fallthru
      _
    // Predicated region
    $region6: #{tpu_custom_call.1} parent=1 // pred_check
      _
    $region7: #{tpu_custom_call.1} parent=1 // pred_check_branch
      %22 = sbr.rel (0) target = $region9
    $region8: #{tpu_custom_call.1} parent=1 // pred_region
      %s24 = ssub.s32 2048, 2048
      %25 = vsyncadd [#allocation6], %s24
      %s26 = sshll.u32 [#allocation5], 4
      %s27 = int_to_ptr.vmem [resolvable:$true] %s26
      %32 = dma.hbm_to_vmem [thread:$0]  %s1, 2048, %s27, [#allocation6], 128, 128, 8
    $region9: #{tpu_custom_call.1} parent=1 // pred_fallthru
      _
    // Predicated region
    $region10: #{tpu_custom_call.1} parent=1 // pred_check
      _
    $region11: #{tpu_custom_call.1} parent=1 // pred_check_branch
      %34 = sbr.rel (0) target = $region13
    $region12: #{tpu_custom_call.1} parent=1 // pred_region
      _
    $region13: #{tpu_custom_call.1} parent=1 // pred_fallthru
      _
    // Predicated region
    $region14: #{tpu_custom_call.1} parent=1 // pred_check
      _
    $region15: #{tpu_custom_call.1} parent=1 // pred_check_branch
      %36 = sbr.rel (0) target = $region17
    $region16: #{tpu_custom_call.1} parent=1 // pred_region
      %37 = dma.done [#allocation3], 128
    $region17: #{tpu_custom_call.1} parent=1 // pred_fallthru
      _
    // Predicated region
    $region18: #{tpu_custom_call.1} parent=1 // pred_check
      _
    $region19: #{tpu_custom_call.1} parent=1 // pred_check_branch
      %39 = sbr.rel (0) target = $region21
    $region20: #{tpu_custom_call.1} parent=1 // pred_region
      %40 = dma.done [#allocation6], 2048
    $region21: #{tpu_custom_call.1} parent=1 // pred_fallthru
      _
    %v41 = vld [vmem:[#allocation2] sm:$0xff]
    %v42 = vld [vmem:[#allocation5] sm:$0xff]
    %v43 = vld [vmem:[#allocation5 + $0x8] sm:$0xff]
    %v44 = vld [vmem:[#allocation5 + $0x10] sm:$0xff]
    %v45 = vld [vmem:[#allocation5 + $0x18] sm:$0xff]
    %v46 = vld [vmem:[#allocation5 + $0x20] sm:$0xff]
    %v47 = vld [vmem:[#allocation5 + $0x28] sm:$0xff]
    %v48 = vld [vmem:[#allocation5 + $0x30] sm:$0xff]
    %v49 = vld [vmem:[#allocation5 + $0x38] sm:$0xff]
    %v50 = vld [vmem:[#allocation5 + $0x40] sm:$0xff]
    %v51 = vld [vmem:[#allocation5 + $0x48] sm:$0xff]
    %v52 = vld [vmem:[#allocation5 + $0x50] sm:$0xff]
    %v53 = vld [vmem:[#allocation5 + $0x58] sm:$0xff]
    %v54 = vld [vmem:[#allocation5 + $0x60] sm:$0xff]
    %v55 = vld [vmem:[#allocation5 + $0x68] sm:$0xff]
    %v56 = vld [vmem:[#allocation5 + $0x70] sm:$0xff]
    %v57 = vld [vmem:[#allocation5 + $0x78] sm:$0xff]
    %58 = vmatprep.subr.mxu0 0.0
    %59 = vmatpush1.msra.mxu0 %v42
    %60 = vmatprep.subr.mxu0 0.0
    %61 = vmatpush1.msra.mxu0 %v43
    %62 = vmatprep.subr.mxu0 0.0
    %63 = vmatpush1.msra.mxu0 %v44
    %64 = vmatprep.subr.mxu0 0.0
    %65 = vmatpush1.msra.mxu0 %v45
    %66 = vmatprep.subr.mxu0 0.0
    %67 = vmatpush1.msra.mxu0 %v46
    %68 = vmatprep.subr.mxu0 0.0
    %69 = vmatpush1.msra.mxu0 %v47
    %70 = vmatprep.subr.mxu0 0.0
    %71 = vmatpush1.msra.mxu0 %v48
    %72 = vmatprep.subr.mxu0 0.0
    %73 = vmatpush1.msra.mxu0 %v49
    %74 = vmatprep.subr.mxu0 0.0
    %75 = vmatpush1.msra.mxu0 %v50
    %76 = vmatprep.subr.mxu0 0.0
    %77 = vmatpush1.msra.mxu0 %v51
    %78 = vmatprep.subr.mxu0 0.0
    %79 = vmatpush1.msra.mxu0 %v52
    %80 = vmatprep.subr.mxu0 0.0
    %81 = vmatpush1.msra.mxu0 %v53
    %82 = vmatprep.subr.mxu0 0.0
    %83 = vmatpush1.msra.mxu0 %v54
    %84 = vmatprep.subr.mxu0 0.0
    %85 = vmatpush1.msra.mxu0 %v55
    %86 = vmatprep.subr.mxu0 0.0
    %87 = vmatpush1.msra.mxu0 %v56
    %88 = vmatprep.subr.mxu0 0.0
    %89 = vmatpush1.msra.mxu0 %v57
    %90 = vmatprep.subr.mxu0 0.0
    %91 = vmatpush1.msra.mxu0 0.0
    %92 = vmatprep.subr.mxu0 0.0
    %93 = vmatpush1.msra.mxu0 0.0
    %94 = vmatprep.subr.mxu0 0.0
    %95 = vmatpush1.msra.mxu0 0.0
    %96 = vmatprep.subr.mxu0 0.0
    %97 = vmatpush1.msra.mxu0 0.0
    %98 = vmatprep.subr.mxu0 0.0
    %99 = vmatpush1.msra.mxu0 0.0
    %100 = vmatprep.subr.mxu0 0.0
    %101 = vmatpush1.msra.mxu0 0.0
    %102 = vmatprep.subr.mxu0 0.0
    %103 = vmatpush1.msra.mxu0 0.0
    %104 = vmatprep.subr.mxu0 0.0
    %105 = vmatpush1.msra.mxu0 0.0
    %106 = vmatprep.subr.mxu0 0.0
    %107 = vmatpush1.msra.mxu0 0.0
    %108 = vmatprep.subr.mxu0 0.0
    %109 = vmatpush1.msra.mxu0 0.0
    %110 = vmatprep.subr.mxu0 0.0
    %111 = vmatpush1.msra.mxu0 0.0
    %112 = vmatprep.subr.mxu0 0.0
    %113 = vmatpush1.msra.mxu0 0.0
    %114 = vmatprep.subr.mxu0 0.0
    %115 = vmatpush1.msra.mxu0 0.0
    %116 = vmatprep.subr.mxu0 0.0
    %117 = vmatpush1.msra.mxu0 0.0
    %118 = vmatprep.subr.mxu0 0.0
    %119 = vmatpush1.msra.mxu0 0.0
    %120 = vmatprep.subr.mxu0 0.0
    %121 = vmatpush1.msra.mxu0 0.0
    %122 = vmatprep.mubr.f32.mxu0 0.0
    %123 = vmatmul.mubr.f32.gmra.mrb[0].mxu0 %v41
    %v124 = vpop.f32.mrb[0].mxu0
    %v125 = vadd.f32 0.0, %v124
    %v126 = vpop.f32.mrb[0].mxu0
    %127 = vdwg.mxu0
    %v128 = vmul.f32 %v125, 0.17677669
    %v129 = vld [vmem:[%s2] sm:$0x1]
    %v131 = vlaneseq
    %v132 = vshrl.u32 %v131, 7
    %v133 = vsub.s32 0, %v132
    %v134 = vrot.slane %v129, %v133
    %v136 = vadd.f32 %v128, %v134
    %137 = vst [vmem:[#allocation7] sm:$0xff] %v136
    // Predicated region
    $region22: #{tpu_custom_call.1} parent=1 // pred_check
      _
    $region23: #{tpu_custom_call.1} parent=1 // pred_check_branch
      %139 = sbr.rel (0) target = $region25
    $region24: #{tpu_custom_call.1} parent=1 // pred_region
      %s141 = ssub.s32 128, 128
      %142 = vsyncadd [#allocation4], %s141
      %s144 = sshll.u32 [#allocation7], 4
      %s145 = int_to_ptr.vmem [resolvable:$true] %s144
      %147 = dma.vmem_to_hbm [thread:$0]  %s145, 128, %s3, [#allocation4]
    $region25: #{tpu_custom_call.1} parent=1 // pred_fallthru
      _
    // Predicated region
    $region26: #{tpu_custom_call.1} parent=1 // pred_check
      _
    $region27: #{tpu_custom_call.1} parent=1 // pred_check_branch
      %149 = sbr.rel (0) target = $region29
    $region28: #{tpu_custom_call.1} parent=1 // pred_region
      %150 = dma.done [#allocation4], 128
    $region29: #{tpu_custom_call.1} parent=1 // pred_fallthru
      _
    %151 = vsyncpa [#allocation3], 1
    %152 = vsyncpa [#allocation6], 1
    %153 = vsyncpa [#allocation4], 1

</llo_original>
